<compile_context>
chip_gen: v5e
topology: v5e:2x2
jax: 0.10.0
libtpu: 0.0.40
codegen_flags: <defaults>
</compile_context>

<pallas_src>
import functools

import jax
import jax.numpy as jnp
from jax import lax
from jax.experimental import pallas as pl
from jax.experimental.pallas import tpu as pltpu
import numpy as np

EPS = 1e-10


def _loss_similarity_kernel(seg_ref, box_ref, score_ref, out_ref, acc_ref, *,
                            n_valid):
    C, tile_h, W = seg_ref.shape
    Rp = box_ref.shape[1]
    h_step = pl.program_id(0)

    @pl.when(h_step == 0)
    def _init():
        acc_ref[...] = jnp.zeros_like(acc_ref)

    # ---- channel softmax of this row block; only channel 1 is used ----------
    seg = seg_ref[...]                                        # (C, tile_h, W)
    if C == 2:
        # Binary case: softmax channel 1 == sigmoid(seg1 - seg0); one exp/pixel.
        z = seg[0] - seg[1]
        score_map = pl.reciprocal(1.0 + jnp.exp(z), approx=False)     # (tile_h, W)
    else:
        m = jnp.max(seg, axis=0, keepdims=True)               # (1, tile_h, W)
        e = jnp.exp(seg - m)                                  # (C, tile_h, W)
        denom = jnp.sum(e, axis=0)                            # (tile_h, W)
        score_map = e[1] * pl.reciprocal(denom, approx=False)  # (tile_h, W)

    # ---- separable ROI masks for this row block, R on the lane axis ---------
    box = box_ref[...]                                        # (4, Rp) int32
    x1 = box[0:1, :]                                          # (1, Rp)
    y1 = box[1:2, :]
    x2 = box[2:3, :]
    y2 = box[3:4, :]

    row0 = h_step * tile_h                                    # global row offset
    h_iota = lax.broadcasted_iota(jnp.int32, (tile_h, Rp), 0) + row0
    w_iota = lax.broadcasted_iota(jnp.int32, (W, Rp), 0)
    my = (h_iota >= y1) & (h_iota < y2)                       # (tile_h, Rp) bool
    mx = ((w_iota >= x1) & (w_iota < x2)).astype(jnp.float32)  # (W, Rp)

    # ---- per-ROI partial box sums: one MXU matmul + a tile_h sublane reduce --
    tmp = jnp.dot(score_map, mx,
                  preferred_element_type=jnp.float32,
                  precision=lax.Precision.HIGHEST)            # (tile_h, Rp)
    acc_ref[...] += jnp.sum(jnp.where(my, tmp, 0.0), axis=0, keepdims=True)

    # ---- epilogue on the last row block: iou + pairwise similarity MSE ------
    @pl.when(h_step == pl.num_programs(0) - 1)
    def _epilogue():
        # Padded ROIs are unit boxes -> area >= 1, reciprocal is always finite.
        area = ((x2 - x1) * (y2 - y1)).astype(jnp.float32)    # (1, Rp)
        iou_row = acc_ref[...] * pl.reciprocal(area, approx=False)   # (1, Rp)
        iou_col = jnp.transpose(iou_row)                      # (Rp, 1)
        d_iou = iou_col - iou_row                             # (Rp, Rp)
        sim_iou = jnp.sqrt(d_iou * d_iou + EPS)

        sc_row = score_ref[...]                               # (1, Rp)
        sc_col = jnp.transpose(sc_row)                        # (Rp, 1)
        d_sc = sc_col - sc_row                                # (Rp, Rp)
        sim_sc = jnp.sqrt(d_sc * d_sc + EPS)

        # Mask out the padded ROIs from the mean; divide by the real R^2.
        lane = lax.broadcasted_iota(jnp.int32, (1, Rp), 1)
        v_row = (lane < n_valid).astype(jnp.float32)          # (1, Rp)
        pair_valid = jnp.transpose(v_row) * v_row             # (Rp, Rp)

        diff = sim_iou - sim_sc
        total = jnp.sum(pair_valid * (diff * diff), axis=(0, 1), keepdims=True)
        out_ref[...] = total * (1.0 / float(n_valid * n_valid))


def loss_similarity_pallas(ssw, seg, score, *, tile_h=None):
    """Pallas implementation of loss_similarity.forward(ssw, seg, score)."""
    seg0 = jnp.asarray(seg)[0].astype(jnp.float32)            # (C, H, W), batch 0
    C, H, W = seg0.shape
    assert C >= 2, "softmax score_map uses channel 1; need C >= 2"

    boxes = jnp.asarray(ssw)[0, :, 1:5].astype(jnp.int32)     # (R, 4) = x1,y1,x2,y2
    R = boxes.shape[0]

    # ---- pad R to a lane-dense multiple of 128 (unit boxes, zero scores) ----
    Rp = max(128, ((R + 127) // 128) * 128)
    box_t = boxes.T                                           # (4, R)
    score_row = jnp.asarray(score).reshape(1, R).astype(jnp.float32)
    if Rp != R:
        pad_box = jnp.tile(jnp.array([[0], [0], [1], [1]], jnp.int32),
                           (1, Rp - R))                       # unit boxes, area 1
        box_t = jnp.concatenate([box_t, pad_box], axis=1)     # (4, Rp)
        score_row = jnp.concatenate(
            [score_row, jnp.zeros((1, Rp - R), jnp.float32)], axis=1)

    # ---- choose the H tile: keep one seg tile around ~4 MiB so double-buffer
    # + softmax intermediates stay well under VMEM (64 MiB/TC on v7x). --------
    if tile_h is None:
        rows = max(8, (4 << 20) // max(1, C * W * 4))
        tile_h = min(H, rows)
    tile_h = max(1, min(int(tile_h), H))
    if H >= 8:
        tile_h = max(8, (tile_h // 8) * 8)

    # Pad H to a multiple of tile_h with zero logits; padded rows have global
    # index >= H and never intersect a valid box, so they are masked out.
    Hp = ((H + tile_h - 1) // tile_h) * tile_h
    if Hp != H:
        seg0 = jnp.pad(seg0, ((0, 0), (0, Hp - H), (0, 0)))
    n_blocks = Hp // tile_h

    kernel = functools.partial(_loss_similarity_kernel, n_valid=R)
    out = pl.pallas_call(
        kernel,
        out_shape=jax.ShapeDtypeStruct((1, 1), jnp.float32),
        grid_spec=pltpu.PrefetchScalarGridSpec(
            num_scalar_prefetch=0,
            grid=(n_blocks,),
            in_specs=[
                pl.BlockSpec((C, tile_h, W), lambda h: (0, h, 0)),   # seg row block
                pl.BlockSpec((4, Rp), lambda h: (0, 0)),             # boxes (resident)
                pl.BlockSpec((1, Rp), lambda h: (0, 0)),             # scores (resident)
            ],
            out_specs=pl.BlockSpec((1, 1), lambda h: (0, 0)),
            scratch_shapes=[pltpu.VMEM((1, Rp), jnp.float32)],        # s_row accumulator
        ),
        compiler_params=pltpu.CompilerParams(
            dimension_semantics=("arbitrary",),
            vmem_limit_bytes=32 * 1024 * 1024,
        ),
    )(seg0, box_t, score_row)
    return out[0, 0]


def loss_similarity_ref(ssw, seg, score):
    """Pure numpy/JAX reference mirroring the PyTorch module."""
    boxes = np.asarray(ssw)[0, :, 1:5].astype(np.int32)
    seg_sm = np.asarray(jax.nn.softmax(jnp.asarray(seg), axis=1))
    score_map = seg_sm[0, 1]
    R = boxes.shape[0]
    iou = np.empty((R,), dtype=np.float32)
    for i in range(R):
        x1, y1, x2, y2 = boxes[i]
        iou[i] = score_map[y1:y2, x1:x2].mean()
    s = np.asarray(score).reshape(R).astype(np.float32)
    sim_iou = np.sqrt((iou[:, None] - iou[None, :]) ** 2 + EPS)
    sim_sc = np.sqrt((s[:, None] - s[None, :]) ** 2 + EPS)
    return np.mean((sim_iou - sim_sc) ** 2)


if __name__ == "__main__":
    B, C, H, W = 2, 4, 16, 16
    R = 8

    key = jax.random.PRNGKey(0)
    k_seg, k_sc, k_x1, k_y1, k_x2, k_y2 = jax.random.split(key, 6)

    seg = jax.random.normal(k_seg, (B, C, H, W), dtype=jnp.float32)
    score = jax.random.uniform(k_sc, (R, 1), dtype=jnp.float32)

    # Deterministic, valid boxes: x2 > x1, y2 > y1, all within [0, W] / [0, H].
    x1 = jax.random.randint(k_x1, (R,), 0, W // 2)
    y1 = jax.random.randint(k_y1, (R,), 0, H // 2)
    x2 = x1 + 1 + jax.random.randint(k_x2, (R,), 0, W - W // 2)
    y2 = y1 + 1 + jax.random.randint(k_y2, (R,), 0, H - H // 2)
    ssw = jnp.stack(
        [jnp.zeros((R,), jnp.float32),
         x1.astype(jnp.float32), y1.astype(jnp.float32),
         x2.astype(jnp.float32), y2.astype(jnp.float32)], axis=1
    ).reshape(1, R, 5)

    # tile_h=8 -> 2 grid steps at this toy H, exercising the accumulator path.
    loss = loss_similarity_pallas(ssw, seg, score, tile_h=8)
    loss = jax.block_until_ready(loss)

    ref = loss_similarity_ref(ssw, seg, score)
    assert np.allclose(np.asarray(loss), ref, rtol=1e-4, atol=1e-5), (loss, ref)

    print("KERNEL_OK")
</pallas_src>

<mosaic_0001>
module attributes {stable_mosaic.version = 11 : i64} {
  func.func @_loss_similarity_kernel(%arg0: i32, %arg1: memref<4x8x16xf32, #tpu.memory_space<vmem>>, %arg2: memref<4x128xi32, #tpu.memory_space<vmem>>, %arg3: memref<1x128xf32, #tpu.memory_space<vmem>>, %arg4: memref<1x1xf32, #tpu.memory_space<vmem>>, %arg5: memref<1x128xf32, #tpu.memory_space<vmem>>) attributes {dimension_semantics = [#tpu.dimension_semantics<arbitrary>], iteration_bounds = array<i64: 2>, scalar_prefetch = 0 : i64, scratch_operands = 1 : i64, tpu.core_type = #tpu.core_type<tc>, window_params = [{transform_indices = @transform_0, window_bounds = array<i64: 4, 8, 16>}, {pipeline_mode = #tpu.pipeline_mode<synchronous>, transform_indices = @transform_1, window_bounds = array<i64: 4, 128>}, {pipeline_mode = #tpu.pipeline_mode<synchronous>, transform_indices = @transform_2, window_bounds = array<i64: 1, 128>}, {pipeline_mode = #tpu.pipeline_mode<synchronous>, transform_indices = @transform_3, window_bounds = array<i64: 1, 1>}]} {
    %c0_i32 = arith.constant 0 : i32
    %0 = arith.cmpi eq, %arg0, %c0_i32 : i32
    %1 = arith.extui %0 : i1 to i32
    %c0_i32_0 = arith.constant 0 : i32
    %2 = arith.cmpi ne, %1, %c0_i32_0 : i32
    scf.if %2 {
      %cst_14 = arith.constant 0.000000e+00 : f32
      %47 = vector.broadcast %cst_14 : f32 to vector<1x128xf32>
      %c0_15 = arith.constant 0 : index
      %c0_16 = arith.constant 0 : index
      %48 = vector.load %arg5[%c0_15, %c0_16] : memref<1x128xf32, #tpu.memory_space<vmem>>, vector<1x128xf32>
      tpu.vector_store %arg5[%c0_15, %c0_16], %47 {strides = array<i32>} : memref<1x128xf32, #tpu.memory_space<vmem>>, vector<1x128xf32>,
    } else {
    }
    %c0 = arith.constant 0 : index
    %c0_1 = arith.constant 0 : index
    %c0_2 = arith.constant 0 : index
    %3 = vector.load %arg1[%c0, %c0_1, %c0_2] : memref<4x8x16xf32, #tpu.memory_space<vmem>>, vector<4x8x16xf32>
    %cst = arith.constant dense<0xFF800000> : vector<8x16xf32>
    %4 = vector.multi_reduction <maximumf>, %3, %cst [0] : vector<4x8x16xf32> to vector<8x16xf32>
    %5 = vector.shape_cast %4 : vector<8x16xf32> to vector<1x8x16xf32>
    %6 = vector.broadcast %5 : vector<1x8x16xf32> to vector<4x8x16xf32>
    %7 = arith.subf %3, %6 : vector<4x8x16xf32>
    %8 = math.exp %7 : vector<4x8x16xf32>
    %cst_3 = arith.constant dense<0.000000e+00> : vector<8x16xf32>
    %9 = vector.multi_reduction <add>, %8, %cst_3 [0] : vector<4x8x16xf32> to vector<8x16xf32>
    %10 = vector.extract_strided_slice %8 {offsets = [1, 0, 0], sizes = [1, 8, 16], strides = [1, 1, 1]} : vector<4x8x16xf32> to vector<1x8x16xf32>
    %11 = vector.shape_cast %10 : vector<1x8x16xf32> to vector<8x16xf32>
    %12 = tpu.reciprocal %9 : vector<8x16xf32> -> vector<8x16xf32>
    %13 = arith.mulf %11, %12 : vector<8x16xf32>
    %c0_4 = arith.constant 0 : index
    %c0_5 = arith.constant 0 : index
    %14 = vector.load %arg2[%c0_4, %c0_5] : memref<4x128xi32, #tpu.memory_space<vmem>>, vector<4x128xi32>
    %15 = vector.extract_strided_slice %14 {offsets = [0, 0], sizes = [1, 128], strides = [1, 1]} : vector<4x128xi32> to vector<1x128xi32>
    %16 = vector.extract_strided_slice %14 {offsets = [1, 0], sizes = [1, 128], strides = [1, 1]} : vector<4x128xi32> to vector<1x128xi32>
    %17 = vector.extract_strided_slice %14 {offsets = [2, 0], sizes = [1, 128], strides = [1, 1]} : vector<4x128xi32> to vector<1x128xi32>
    %18 = vector.extract_strided_slice %14 {offsets = [3, 0], sizes = [1, 128], strides = [1, 1]} : vector<4x128xi32> to vector<1x128xi32>
    %c8_i32 = arith.constant 8 : i32
    %19 = arith.muli %arg0, %c8_i32 : i32
    %20 = tpu.iota {dimensions = array<i32: 0>} : vector<8x128xi32>
    %21 = vector.broadcast %19 : i32 to vector<8x128xi32>
    %22 = arith.addi %20, %21 : vector<8x128xi32>
    %23 = tpu.iota {dimensions = array<i32: 0>} : vector<16x128xi32>
    %24 = vector.broadcast %16 : vector<1x128xi32> to vector<8x128xi32>
    %25 = arith.cmpi sge, %22, %24 : vector<8x128xi32>
    %26 = vector.broadcast %18 : vector<1x128xi32> to vector<8x128xi32>
    %27 = arith.cmpi slt, %22, %26 : vector<8x128xi32>
    %28 = arith.andi %25, %27 : vector<8x128xi1>
    %29 = vector.broadcast %15 : vector<1x128xi32> to vector<16x128xi32>
    %30 = arith.cmpi sge, %23, %29 : vector<16x128xi32>
    %31 = vector.broadcast %17 : vector<1x128xi32> to vector<16x128xi32>
    %32 = arith.cmpi slt, %23, %31 : vector<16x128xi32>
    %33 = arith.andi %30, %32 : vector<16x128xi1>
    %34 = arith.extui %33 : vector<16x128xi1> to vector<16x128xi32>
    %35 = arith.sitofp %34 : vector<16x128xi32> to vector<16x128xf32>
    %cst_6 = arith.constant dense<0.000000e+00> : vector<8x128xf32>
    %36 = tpu.matmul %13, %35, %cst_6 {dimension_numbers = #tpu.dot_dimension_numbers<[1], [0], [0], [1], [0, 0, 1, 1], [], []>, precision = #tpu.contract_precision<fp32>} : vector<8x16xf32>, vector<16x128xf32>, vector<8x128xf32> -> vector<8x128xf32>
    %c0_7 = arith.constant 0 : index
    %c0_8 = arith.constant 0 : index
    %37 = vector.load %arg5[%c0_7, %c0_8] : memref<1x128xf32, #tpu.memory_space<vmem>>, vector<1x128xf32>
    %cst_9 = arith.constant 0.000000e+00 : f32
    %38 = vector.broadcast %cst_9 : f32 to vector<8x128xf32>
    %39 = arith.select %28, %36, %38 : vector<8x128xi1>, vector<8x128xf32>
    %cst_10 = arith.constant dense<0.000000e+00> : vector<128xf32>
    %40 = vector.multi_reduction <add>, %39, %cst_10 [0] : vector<8x128xf32> to vector<128xf32>
    %41 = vector.shape_cast %40 : vector<128xf32> to vector<1x128xf32>
    %42 = arith.addf %37, %41 : vector<1x128xf32>
    %c0_11 = arith.constant 0 : index
    %c0_12 = arith.constant 0 : index
    %43 = vector.load %arg5[%c0_11, %c0_12] : memref<1x128xf32, #tpu.memory_space<vmem>>, vector<1x128xf32>
    tpu.vector_store %arg5[%c0_11, %c0_12], %42 {strides = array<i32>} : memref<1x128xf32, #tpu.memory_space<vmem>>, vector<1x128xf32>,
    %c1_i32 = arith.constant 1 : i32
    %44 = arith.cmpi eq, %arg0, %c1_i32 : i32
    %45 = arith.extui %44 : i1 to i32
    %c0_i32_13 = arith.constant 0 : i32
    %46 = arith.cmpi ne, %45, %c0_i32_13 : i32
    scf.if %46 {
      %47 = arith.subi %17, %15 : vector<1x128xi32>
      %48 = arith.subi %18, %16 : vector<1x128xi32>
      %49 = arith.muli %47, %48 : vector<1x128xi32>
      %50 = arith.sitofp %49 : vector<1x128xi32> to vector<1x128xf32>
      %c0_14 = arith.constant 0 : index
      %c0_15 = arith.constant 0 : index
      %51 = vector.load %arg5[%c0_14, %c0_15] : memref<1x128xf32, #tpu.memory_space<vmem>>, vector<1x128xf32>
      %52 = tpu.reciprocal %50 : vector<1x128xf32> -> vector<1x128xf32>
      %53 = arith.mulf %51, %52 : vector<1x128xf32>
      %54 = tpu.transpose %53, [1, 0] : vector<1x128xf32> -> vector<128x1xf32>
      %55 = vector.broadcast %54 : vector<128x1xf32> to vector<128x128xf32>
      %56 = vector.broadcast %53 : vector<1x128xf32> to vector<128x128xf32>
      %57 = arith.subf %55, %56 : vector<128x128xf32>
      %58 = arith.mulf %57, %57 : vector<128x128xf32>
      %cst_16 = arith.constant 1.000000e-10 : f32
      %59 = vector.broadcast %cst_16 : f32 to vector<128x128xf32>
      %60 = arith.addf %58, %59 : vector<128x128xf32>
      %61 = math.sqrt %60 : vector<128x128xf32>
      %c0_17 = arith.constant 0 : index
      %c0_18 = arith.constant 0 : index
      %62 = vector.load %arg3[%c0_17, %c0_18] : memref<1x128xf32, #tpu.memory_space<vmem>>, vector<1x128xf32>
      %63 = tpu.transpose %62, [1, 0] : vector<1x128xf32> -> vector<128x1xf32>
      %64 = vector.broadcast %63 : vector<128x1xf32> to vector<128x128xf32>
      %65 = vector.broadcast %62 : vector<1x128xf32> to vector<128x128xf32>
      %66 = arith.subf %64, %65 : vector<128x128xf32>
      %67 = arith.mulf %66, %66 : vector<128x128xf32>
      %cst_19 = arith.constant 1.000000e-10 : f32
      %68 = vector.broadcast %cst_19 : f32 to vector<128x128xf32>
      %69 = arith.addf %67, %68 : vector<128x128xf32>
      %70 = math.sqrt %69 : vector<128x128xf32>
      %71 = tpu.iota {dimensions = array<i32: 1>} : vector<1x128xi32>
      %c8_i32_20 = arith.constant 8 : i32
      %72 = vector.broadcast %c8_i32_20 : i32 to vector<1x128xi32>
      %73 = arith.cmpi slt, %71, %72 : vector<1x128xi32>
      %74 = arith.extui %73 : vector<1x128xi1> to vector<1x128xi32>
      %75 = arith.sitofp %74 : vector<1x128xi32> to vector<1x128xf32>
      %76 = tpu.transpose %75, [1, 0] : vector<1x128xf32> -> vector<128x1xf32>
      %77 = vector.broadcast %76 : vector<128x1xf32> to vector<128x128xf32>
      %78 = vector.broadcast %75 : vector<1x128xf32> to vector<128x128xf32>
      %79 = arith.mulf %77, %78 : vector<128x128xf32>
      %80 = arith.subf %61, %70 : vector<128x128xf32>
      %81 = arith.mulf %80, %80 : vector<128x128xf32>
      %82 = arith.mulf %79, %81 : vector<128x128xf32>
      %83 = vector.shape_cast %82 : vector<128x128xf32> to vector<1x128x128xf32>
      %cst_21 = arith.constant dense<0.000000e+00> : vector<1xf32>
      %84 = vector.multi_reduction <add>, %83, %cst_21 [1, 2] : vector<1x128x128xf32> to vector<1xf32>
      %85 = vector.shape_cast %84 : vector<1xf32> to vector<1x1x1xf32>
      %86 = vector.extract %85[0, 0, 0] : f32 from vector<1x1x1xf32>
      %87 = vector.broadcast %86 : f32 to vector<1x1xf32>
      %cst_22 = arith.constant 1.562500e-02 : f32
      %88 = vector.broadcast %cst_22 : f32 to vector<1x1xf32>
      %89 = arith.mulf %87, %88 : vector<1x1xf32>
      %c0_23 = arith.constant 0 : index
      %c0_24 = arith.constant 0 : index
      %90 = vector.load %arg4[%c0_23, %c0_24] : memref<1x1xf32, #tpu.memory_space<vmem>>, vector<1x1xf32>
      tpu.vector_store %arg4[%c0_23, %c0_24], %89 {strides = array<i32>} : memref<1x1xf32, #tpu.memory_space<vmem>>, vector<1x1xf32>,
    } else {
    }
    return
  }
  func.func @transform_0(%arg0: i32) -> (i32, i32, i32) {
    %c0_i32 = arith.constant 0 : i32
    %c0_i32_0 = arith.constant 0 : i32
    %c0_i32_1 = arith.constant 0 : i32
    return %c0_i32, %arg0, %c0_i32_0 : i32, i32, i32
  }
  func.func @transform_1(%arg0: i32) -> (i32, i32) {
    %c0_i32 = arith.constant 0 : i32
    %c0_i32_0 = arith.constant 0 : i32
    %c0_i32_1 = arith.constant 0 : i32
    return %c0_i32, %c0_i32_0 : i32, i32
  }
  func.func @transform_2(%arg0: i32) -> (i32, i32) {
    %c0_i32 = arith.constant 0 : i32
    %c0_i32_0 = arith.constant 0 : i32
    %c0_i32_1 = arith.constant 0 : i32
    return %c0_i32, %c0_i32_0 : i32, i32
  }
  func.func @transform_3(%arg0: i32) -> (i32, i32) {
    %c0_i32 = arith.constant 0 : i32
    %c0_i32_0 = arith.constant 0 : i32
    %c0_i32_1 = arith.constant 0 : i32
    return %c0_i32, %c0_i32_0 : i32, i32
  }
}

</mosaic_0001>

<llo_original>
// kernel: tpu_custom_call.1
$region0: #{tpu_custom_call.1}
  #allocation0 [shape = 'u32[]', space=smem, size = 0x4, offset = 0x4, fixed_abs, tag = 'smem constant byte address 0x4 - core index']
  #allocation1 [shape = 'u32[72,128]{1,0:T(1,128)}', space=vmem, size = 0x9000, scoped, tag = 'internal scratch']
  #allocation2 [shape = 'f32[1,128]{1,0:T(1,128)}', space=vmem, size = 0x200, scoped, tag = 'scratch operand']
  %s0 = inlined_call_operand.hbm [shape: f32[4,16,16], index: 0, kind: input, shape index: {}]
  %s1 = inlined_call_operand.hbm [shape: s32[4,128], index: 1, kind: input, shape index: {}]
  %s2 = inlined_call_operand.vmem [shape: f32[1,128], index: 2, kind: input, shape index: {}]
  %s3 = inlined_call_operand.hbm [shape: f32[1,1], index: 3, kind: output, shape index: {}]
  %s4 = sld [smem:[#allocation0]]
  $region61: #{tpu_custom_call.1} parent=0
    _
  %s6 = ssub.s32 1, %s4
  %s7 = scalar_select 0, %s6, %s4
  $region1: #{tpu_custom_call.1} parent=0
    #allocation3 [shape = 'u8[32768]{0}', space=vmem, size = 0x8000, scoped, tag = 'input window, operand 0']
    #allocation4 [shape = 's32[2]{0}', space=sflag, size = 0x8, scoped, tag = 'scoped memory for tpu_custom_call.1']
    #allocation5 [shape = 's32[2]{0}', space=sflag, size = 0x8, scoped, tag = 'scoped memory for tpu_custom_call.1']
    #allocation6 [shape = 'u8[2048]{0}', space=vmem, size = 0x800, scoped, tag = 'input window, operand 1, single buffered']
    #allocation7 [shape = 's32[1]{0}', space=sflag, size = 0x4, scoped, tag = 'scoped memory for tpu_custom_call.1']
    #allocation8 [shape = 'u8[512]{0}', space=vmem, size = 0x400, scoped, tag = 'output window, operand 0, single buffered']
    %8 = vsyncpa [#allocation4], 0
    %s9 = scalar_lea.sflag [#allocation4], 1
    %10 = vsyncpa %s9, 0
    %11 = vsyncpa [#allocation7], 0
    %12 = vsyncpa [#allocation5], 0
    loop: start=0, step=1, limit=4
    $region2: #{tpu_custom_call.1} parent=1 // loop_pre_header
      _
    $region3: #{tpu_custom_call.1} parent=1 // loop_header
      %s14 = sphi 0, %s18
      %p15 = scmp.ge.s32.totalorder %s14, 4
      %s24 = sphi 0, %s26
      %s27 = sphi 0, %s24
      %s28 = sphi 0, %s27
      %s44 = sphi 0, %s28
      %s48 = sphi 0, %s48
      %s50 = sphi 0, %s48
      %s51 = sphi 0, %s50
      %s65 = sphi 0, %s51
      %s69 = sphi 0, %s69
      %s71 = sphi 0, %s69
      %s72 = sphi 0, %s71
      %s86 = sphi 0, %s72
      %s90 = sphi 0, %s90
      %s92 = sphi 0, %s90
      %s93 = sphi 0, %s92
      %s107 = sphi 0, %s93
    $region4: #{tpu_custom_call.1} parent=1 // loop_header_branch
      %17 = sbr.rel (%p15) target = $region8
    $region5: #{tpu_custom_call.1} parent=1 // loop_body
      %s19 = ssub.s32 %s14, 1
      %s20 = ssub.s32 %s14, 2
      %s21 = sadd.s32 %s14, 1
      %s22 = ssub.s32 %s14, %s21
      %p23 = scmp.eq.s32.totalorder %s22, 0
      %s25 = sadd.s32 %s24, 1
      %s26 = scalar_select %p23, %s24, %s25
      %p29 = pneg %p23
      %p30 = scmp.eq.s32.totalorder %s14, 1
      %p31 = por %p29, %p30
      %p32 = scmp.ne.s32.totalorder %s24, %s27
      %p33 = scmp.eq.s32.totalorder %s14, 0
      %p34 = por %p32, %p33
      %p35 = scmp.ne.s32.totalorder %s24, %s27
      %p36 = scmp.eq.s32.totalorder %s19, 1
      %p37 = por %p35, %p36
      %p38 = scmp.ne.s32.totalorder %s27, %s28
      %p39 = scmp.eq.s32.totalorder %s19, 0
      %p40 = por %p38, %p39
      %p41 = scmp.ne.s32.totalorder %s27, %s28
      %p42 = scmp.eq.s32.totalorder %s20, 1
      %p43 = por %p41, %p42
      %p45 = scmp.ne.s32.totalorder %s28, %s44
      %p46 = scmp.eq.s32.totalorder %s20, 0
      %p47 = por %p45, %p46
      %s49 = sadd.s32 %s48, 1
      %p52 = scmp.eq.s32.totalorder %s14, 1
      %p53 = scmp.ne.s32.totalorder %s48, %s50
      %p54 = scmp.eq.s32.totalorder %s14, 0
      %p55 = por %p53, %p54
      %p56 = scmp.ne.s32.totalorder %s48, %s50
      %p57 = scmp.eq.s32.totalorder %s19, 1
      %p58 = por %p56, %p57
      %p59 = scmp.ne.s32.totalorder %s50, %s51
      %p60 = scmp.eq.s32.totalorder %s19, 0
      %p61 = por %p59, %p60
      %p62 = scmp.ne.s32.totalorder %s50, %s51
      %p63 = scmp.eq.s32.totalorder %s20, 1
      %p64 = por %p62, %p63
      %p66 = scmp.ne.s32.totalorder %s51, %s65
      %p67 = scmp.eq.s32.totalorder %s20, 0
      %p68 = por %p66, %p67
      %s70 = sadd.s32 %s69, 1
      %p73 = scmp.eq.s32.totalorder %s14, 1
      %p74 = scmp.ne.s32.totalorder %s69, %s71
      %p75 = scmp.eq.s32.totalorder %s14, 0
      %p76 = por %p74, %p75
      %p77 = scmp.ne.s32.totalorder %s69, %s71
      %p78 = scmp.eq.s32.totalorder %s19, 1
      %p79 = por %p77, %p78
      %p80 = scmp.ne.s32.totalorder %s71, %s72
      %p81 = scmp.eq.s32.totalorder %s19, 0
      %p82 = por %p80, %p81
      %p83 = scmp.ne.s32.totalorder %s71, %s72
      %p84 = scmp.eq.s32.totalorder %s20, 1
      %p85 = por %p83, %p84
      %p87 = scmp.ne.s32.totalorder %s72, %s86
      %p88 = scmp.eq.s32.totalorder %s20, 0
      %p89 = por %p87, %p88
      %s91 = sadd.s32 %s90, 1
      %p94 = scmp.eq.s32.totalorder %s14, 1
      %p95 = scmp.ne.s32.totalorder %s90, %s92
      %p96 = scmp.eq.s32.totalorder %s14, 0
      %p97 = por %p95, %p96
      %p98 = scmp.ne.s32.totalorder %s90, %s92
      %p99 = scmp.eq.s32.totalorder %s19, 1
      %p100 = por %p98, %p99
      %p101 = scmp.ne.s32.totalorder %s92, %s93
      %p102 = scmp.eq.s32.totalorder %s19, 0
      %p103 = por %p101, %p102
      %p104 = scmp.ne.s32.totalorder %s92, %s93
      %p105 = scmp.eq.s32.totalorder %s20, 1
      %p106 = por %p104, %p105
      %p108 = scmp.ne.s32.totalorder %s93, %s107
      %p109 = scmp.eq.s32.totalorder %s20, 0
      %p110 = por %p108, %p109
      %p111 = scmp.le.s32.totalorder 1, %s14
      %p112 = scmp.lt.s32.totalorder %s14, 3
      %p113 = pnand %p111, %p112
      %p114 = pneg %p113
      // Predicated region
      $region9: #{tpu_custom_call.1} parent=5 // pred_check
        _
      $region10: #{tpu_custom_call.1} parent=5 // pred_check_branch
        %116 = sbr.rel (%p113) target = $region12
      $region11: #{tpu_custom_call.1} parent=5 // pred_region
        %s117 = ssub.s32 %s14, 1
        // Predicated region
        $region13: #{tpu_custom_call.1} parent=11 // pred_check
          %p118 = pneg %p61
        $region14: #{tpu_custom_call.1} parent=11 // pred_check_branch
          %120 = sbr.rel (%p118) target = $region16
        $region15: #{tpu_custom_call.1} parent=11 // pred_region
          %122 = vsyncadd [#allocation7], 0
          %s124 = sshll.u32 %s1, 4
          %s125 = int_to_ptr.hbm [resolvable:$true] %s124
          %s126 = sshll.u32 [#allocation6], 4
          %s127 = int_to_ptr.vmem [resolvable:$true] %s126
          %129 = dma.hbm_to_vmem [thread:$0]  %s125, 64, %s127, [#allocation7]
        $region16: #{tpu_custom_call.1} parent=11 // pred_fallthru
          _
        // Predicated region
        $region17: #{tpu_custom_call.1} parent=11 // pred_check
          %p130 = pneg %p82
        $region18: #{tpu_custom_call.1} parent=11 // pred_check_branch
          %132 = sbr.rel (%p130) target = $region20
        $region19: #{tpu_custom_call.1} parent=11 // pred_region
          _
        $region20: #{tpu_custom_call.1} parent=11 // pred_fallthru
          _
      $region12: #{tpu_custom_call.1} parent=5 // pred_fallthru
        _
      %p133 = scmp.lt.s32.totalorder %s14, 2
      // Predicated region
      $region21: #{tpu_custom_call.1} parent=5 // pred_check
        %p134 = pneg %p133
      $region22: #{tpu_custom_call.1} parent=5 // pred_check_branch
        %136 = sbr.rel (%p134) target = $region24
      $region23: #{tpu_custom_call.1} parent=5 // pred_region
        // Predicated region
        $region25: #{tpu_custom_call.1} parent=23 // pred_check
          %p137 = pneg %p34
        $region26: #{tpu_custom_call.1} parent=23 // pred_check_branch
          %139 = sbr.rel (%p137) target = $region28
        $region27: #{tpu_custom_call.1} parent=23 // pred_region
          %s140 = sand.u32 %s24, 1
          %s141 = scalar_lea.sflag [#allocation4], %s140
          %s142 = sand.u32 %s24, 1
          %s143 = smul.addr %s142, 32
          %s144 = scalar_lea.vmem [#allocation3], %s143
          %146 = vsyncadd %s141, 0
          %s147 = smul.addr %s14, 8
          %s148 = scalar_lea.hbm %s0, %s147
          %s149 = sshll.u32 %s148, 4
          %s150 = int_to_ptr.hbm [resolvable:$true] %s149
          %s151 = sshll.u32 %s144, 4
          %s152 = int_to_ptr.vmem [resolvable:$true] %s151
          %157 = dma.hbm_to_vmem [thread:$0]  %s150, 512, %s152, %s141, 256, 128, 8
        $region28: #{tpu_custom_call.1} parent=23 // pred_fallthru
          _
      $region24: #{tpu_custom_call.1} parent=5 // pred_fallthru
        _
      %p158 = scmp.le.s32.totalorder 1, %s14
      %p159 = scmp.lt.s32.totalorder %s14, 3
      %p160 = pnand %p158, %p159
      %p161 = pneg %p160
      // Predicated region
      $region29: #{tpu_custom_call.1} parent=5 // pred_check
        _
      $region30: #{tpu_custom_call.1} parent=5 // pred_check_branch
        %163 = sbr.rel (%p160) target = $region32
      $region31: #{tpu_custom_call.1} parent=5 // pred_region
        %s164 = ssub.s32 %s14, 1
        %s165 = sand.u32 %s27, 1
        %s166 = scalar_lea.sflag [#allocation4], %s165
        %s167 = sand.u32 %s27, 1
        %s168 = smul.addr %s167, 32
        %s169 = scalar_lea.vmem [#allocation3], %s168
        // Predicated region
        $region33: #{tpu_custom_call.1} parent=31 // pred_check
          %p170 = pneg %p40
        $region34: #{tpu_custom_call.1} parent=31 // pred_check_branch
          %172 = sbr.rel (%p170) target = $region36
        $region35: #{tpu_custom_call.1} parent=31 // pred_region
          %174 = dma.done %s166, 512
        $region36: #{tpu_custom_call.1} parent=31 // pred_fallthru
          _
        // Predicated region
        $region37: #{tpu_custom_call.1} parent=31 // pred_check
          %p175 = pneg %p61
        $region38: #{tpu_custom_call.1} parent=31 // pred_check_branch
          %177 = sbr.rel (%p175) target = $region40
        $region39: #{tpu_custom_call.1} parent=31 // pred_region
          %179 = dma.done [#allocation7], 64
        $region40: #{tpu_custom_call.1} parent=31 // pred_fallthru
          _
        %s180 = sand.u32 %s27, 1
        %s181 = scalar_lea.sflag [#allocation4], %s180
        %s182 = sand.u32 %s27, 1
        %s183 = smul.addr %s182, 32
        %s184 = scalar_lea.vmem [#allocation3], %s183
        %p185 = pneg %p40
        %p186 = pneg %p37
        %p187 = pneg %p61
        %p188 = pneg %p58
        %p189 = pneg %p82
        %p190 = pneg %p79
        %p191 = pneg %p103
        %p192 = pneg %p100
        %p193 = scmp.eq.s32.totalorder %s19, 0
        // Predicated region
        $region41: #{tpu_custom_call.1} parent=31 // pred_check
          %p194 = pneg %p193
        $region42: #{tpu_custom_call.1} parent=31 // pred_check_branch
          %196 = sbr.rel (%p194) target = $region44
        $region43: #{tpu_custom_call.1} parent=31 // pred_region
          %197 = vst [vmem:[#allocation2] sm:$0x1] 0.0
        $region44: #{tpu_custom_call.1} parent=31 // pred_fallthru
          _
        %v198 = vld [vmem:[%s169] sm:$0xff]
        %v199 = vld [vmem:[%s169 + $0x8] sm:$0xff]
        %v200 = vld [vmem:[%s169 + $0x10] sm:$0xff]
        %v201 = vld [vmem:[%s169 + $0x18] sm:$0xff]
        %vm202 = vcmask 130048
        %v203 = vsel %vm202, %v198, -inf
        %v204 = vsel %vm202, %v199, -inf
        %v205 = vsel %vm202, %v200, -inf
        %v206 = vsel %vm202, %v201, -inf
        %v207 = vmax.f32 %v203, %v204
        %v208 = vmax.f32 %v205, %v206
        %v209 = vmax.f32 %v207, %v208
        %v210 = vsub.f32 %v198, %v209
        %v211 = vsub.f32 %v199, %v209
        %v212 = vsub.f32 %v200, %v209
        %v213 = vsub.f32 %v201, %v209
        %v214 = vmul.f32 %v210, 1.442695
        %v215 = vpow.pop %v214
        %v216 = vmul.f32 %v211, 1.442695
        %v217 = vpow.pop %v216
        %v218 = vmul.f32 %v212, 1.442695
        %v219 = vpow.pop %v218
        %v220 = vmul.f32 %v213, 1.442695
        %v221 = vpow.pop %v220
        %v222 = vsel %vm202, %v215, 0.0
        %v223 = vsel %vm202, %v217, 0.0
        %v224 = vadd.f32 %v222, %v223
        %v225 = vsel %vm202, %v219, 0.0
        %v226 = vadd.f32 %v224, %v225
        %v227 = vsel %vm202, %v221, 0.0
        %v228 = vadd.f32 %v226, %v227
        %v229 = vrcp.pop %v228
        %v230 = vmul.f32 %v228, %v229
        %v231 = vsub.f32 1.0, %v230
        %v232 = vmul.f32 %v229, %v231
        %v233 = vadd.f32 %v229, %v232
        %vm234 = vweird.f32 %v228
        %vm235 = vweird.f32 %v229
        %vm236 = vmor %vm234, %vm235
        %v237 = vsel %vm236, %v229, %v233
        %v238 = vand.u32 2147483647, %v228
        %vm239 = vcmp.eq.f32.partialorder %v238, 8.507059e+37
        %v240 = vand.u32 %v228, 2147483648
        %v241 = vor.u32 1.1754944e-38, %v240
        %v242 = vsel %vm239, %v241, %v237
        %v243 = vmul.f32 %v217, %v242
        %v244 = vld [vmem:[#allocation6] sm:$0xf]
        %s245 = smul.u32 %s19, 8
        %v246 = vlaneseq
        %v247 = vshrl.u32 %v246, 7
        %v248 = vstv %s245
        %v249 = vadd.s32 %v247, %v248
        %v250 = vadd.s32 %v247, 8
        %v251 = vperm.slane %v244, 1
        %vm252 = vcmp.ge.s32.totalorder %v249, %v251
        %v253 = vperm.slane %v244, 3
        %vm254 = vcmp.lt.s32.totalorder %v249, %v253
        %vm255 = vmand %vm252, %vm254
        %v256 = vperm.slane %v244, 0
        %vm257 = vcmp.ge.s32.totalorder %v247, %v256
        %vm258 = vcmp.ge.s32.totalorder %v250, %v256
        %v259 = vperm.slane %v244, 2
        %vm260 = vcmp.lt.s32.totalorder %v247, %v259
        %vm261 = vcmp.lt.s32.totalorder %v250, %v259
        %vm262 = vmand %vm257, %vm260
        %vm263 = vmand %vm258, %vm261
        %v264 = vsel %vm262, 1, 0
        %v265 = vsel %vm263, 1, 0
        %v266 = vcvt.s32.f32 %v264
        %v267 = vcvt.s32.f32 %v265
        %v269 = vsel %vm202, %v243, 0
        %271 = vmatpush.msra.mxu0 0.0
        %272 = vmatpush.msra.mxu0 0.0
        %273 = vmatpush.msra.mxu0 0.0
        %274 = vmatpush.msra.mxu0 0.0
        %275 = vmatpush.msra.mxu0 0.0
        %276 = vmatpush.msra.mxu0 0.0
        %277 = vmatpush.msra.mxu0 0.0
        %278 = vmatpush.msra.mxu0 0.0
        %279 = vmatpush.msra.mxu0 0.0
        %280 = vmatpush.msra.mxu0 0.0
        %281 = vmatpush.msra.mxu0 0.0
        %282 = vmatpush.msra.mxu0 0.0
        %283 = vmatpush.msra.mxu0 0.0
        %284 = vmatpush.msra.mxu0 0.0
        %v285 = vand.u32 %v267, 4294901760
        %286 = vmatpush.msra.mxu0 %v285
        %v287 = vand.u32 %v266, 4294901760
        %288 = vmatpush.msra.mxu0 %v287
        %v289 = vand.u32 %v269, 4294901760
        %v290 = vsub.f32 %v269, %v289
        %v291 = vand.u32 %v290, 4294901760
        %v292 = vsub.f32 %v290, %v291
        %v293 = vand.u32 %v292, 4294901760
        %294 = vmatmul.f32.gmra.mxu0 %v293
        %v295 = vpop.f32.mrf.mxu0
        %v296 = vadd.f32 0.0, %v295
        %297 = vdwg.mxu0
        %298 = vmatpush.msra.mxu0 0.0
        %299 = vmatpush.msra.mxu0 0.0
        %300 = vmatpush.msra.mxu0 0.0
        %301 = vmatpush.msra.mxu0 0.0
        %302 = vmatpush.msra.mxu0 0.0
        %303 = vmatpush.msra.mxu0 0.0
        %304 = vmatpush.msra.mxu0 0.0
        %305 = vmatpush.msra.mxu0 0.0
        %306 = vmatpush.msra.mxu0 0.0
        %307 = vmatpush.msra.mxu0 0.0
        %308 = vmatpush.msra.mxu0 0.0
        %309 = vmatpush.msra.mxu0 0.0
        %310 = vmatpush.msra.mxu0 0.0
        %311 = vmatpush.msra.mxu0 0.0
        %v312 = vand.u32 %v267, 4294901760
        %v313 = vsub.f32 %v267, %v312
        %v314 = vand.u32 %v313, 4294901760
        %v315 = vsub.f32 %v313, %v314
        %v316 = vand.u32 %v315, 4294901760
        %317 = vmatpush.msra.mxu0 %v316
        %v318 = vand.u32 %v266, 4294901760
        %v319 = vsub.f32 %v266, %v318
        %v320 = vand.u32 %v319, 4294901760
        %v321 = vsub.f32 %v319, %v320
        %v322 = vand.u32 %v321, 4294901760
        %323 = vmatpush.msra.mxu0 %v322
        %v324 = vand.u32 %v269, 4294901760
        %325 = vmatmul.f32.gmra.mxu0 %v324
        %v326 = vpop.f32.mrf.mxu0
        %v327 = vadd.f32 %v296, %v326
        %328 = vdwg.mxu0
        %329 = vmatpush.msra.mxu0 0.0
        %330 = vmatpush.msra.mxu0 0.0
        %331 = vmatpush.msra.mxu0 0.0
        %332 = vmatpush.msra.mxu0 0.0
        %333 = vmatpush.msra.mxu0 0.0
        %334 = vmatpush.msra.mxu0 0.0
        %335 = vmatpush.msra.mxu0 0.0
        %336 = vmatpush.msra.mxu0 0.0
        %337 = vmatpush.msra.mxu0 0.0
        %338 = vmatpush.msra.mxu0 0.0
        %339 = vmatpush.msra.mxu0 0.0
        %340 = vmatpush.msra.mxu0 0.0
        %341 = vmatpush.msra.mxu0 0.0
        %342 = vmatpush.msra.mxu0 0.0
        %v343 = vand.u32 %v267, 4294901760
        %v344 = vsub.f32 %v267, %v343
        %345 = vmatpush.msra.mxu0 %v344
        %v346 = vand.u32 %v266, 4294901760
        %v347 = vsub.f32 %v266, %v346
        %348 = vmatpush.msra.mxu0 %v347
        %v349 = vand.u32 %v269, 4294901760
        %v350 = vsub.f32 %v269, %v349
        %351 = vmatmul.f32.gmra.mxu0 %v350
        %v352 = vpop.f32.mrf.mxu0
        %v353 = vadd.f32 %v327, %v352
        %354 = vdwg.mxu0
        %355 = vmatpush.msra.mxu0 0.0
        %356 = vmatpush.msra.mxu0 0.0
        %357 = vmatpush.msra.mxu0 0.0
        %358 = vmatpush.msra.mxu0 0.0
        %359 = vmatpush.msra.mxu0 0.0
        %360 = vmatpush.msra.mxu0 0.0
        %361 = vmatpush.msra.mxu0 0.0
        %362 = vmatpush.msra.mxu0 0.0
        %363 = vmatpush.msra.mxu0 0.0
        %364 = vmatpush.msra.mxu0 0.0
        %365 = vmatpush.msra.mxu0 0.0
        %366 = vmatpush.msra.mxu0 0.0
        %367 = vmatpush.msra.mxu0 0.0
        %368 = vmatpush.msra.mxu0 0.0
        %v369 = vand.u32 %v267, 4294901760
        %370 = vmatpush.msra.mxu0 %v369
        %v371 = vand.u32 %v266, 4294901760
        %372 = vmatpush.msra.mxu0 %v371
        %v373 = vand.u32 %v269, 4294901760
        %v374 = vsub.f32 %v269, %v373
        %v375 = vand.u32 %v374, 4294901760
        %376 = vmatmul.f32.gmra.mxu0 %v375
        %v377 = vpop.f32.mrf.mxu0
        %v378 = vadd.f32 %v353, %v377
        %379 = vdwg.mxu0
        %380 = vmatpush.msra.mxu0 0.0
        %381 = vmatpush.msra.mxu0 0.0
        %382 = vmatpush.msra.mxu0 0.0
        %383 = vmatpush.msra.mxu0 0.0
        %384 = vmatpush.msra.mxu0 0.0
        %385 = vmatpush.msra.mxu0 0.0
        %386 = vmatpush.msra.mxu0 0.0
        %387 = vmatpush.msra.mxu0 0.0
        %388 = vmatpush.msra.mxu0 0.0
        %389 = vmatpush.msra.mxu0 0.0
        %390 = vmatpush.msra.mxu0 0.0
        %391 = vmatpush.msra.mxu0 0.0
        %392 = vmatpush.msra.mxu0 0.0
        %393 = vmatpush.msra.mxu0 0.0
        %v394 = vand.u32 %v267, 4294901760
        %v395 = vsub.f32 %v267, %v394
        %v396 = vand.u32 %v395, 4294901760
        %397 = vmatpush.msra.mxu0 %v396
        %v398 = vand.u32 %v266, 4294901760
        %v399 = vsub.f32 %v266, %v398
        %v400 = vand.u32 %v399, 4294901760
        %401 = vmatpush.msra.mxu0 %v400
        %v402 = vand.u32 %v269, 4294901760
        %403 = vmatmul.f32.gmra.mxu0 %v402
        %v404 = vpop.f32.mrf.mxu0
        %v405 = vadd.f32 %v378, %v404
        %406 = vdwg.mxu0
        %407 = vmatpush.msra.mxu0 0.0
        %408 = vmatpush.msra.mxu0 0.0
        %409 = vmatpush.msra.mxu0 0.0
        %410 = vmatpush.msra.mxu0 0.0
        %411 = vmatpush.msra.mxu0 0.0
        %412 = vmatpush.msra.mxu0 0.0
        %413 = vmatpush.msra.mxu0 0.0
        %414 = vmatpush.msra.mxu0 0.0
        %415 = vmatpush.msra.mxu0 0.0
        %416 = vmatpush.msra.mxu0 0.0
        %417 = vmatpush.msra.mxu0 0.0
        %418 = vmatpush.msra.mxu0 0.0
        %419 = vmatpush.msra.mxu0 0.0
        %420 = vmatpush.msra.mxu0 0.0
        %v421 = vand.u32 %v267, 4294901760
        %422 = vmatpush.msra.mxu0 %v421
        %v423 = vand.u32 %v266, 4294901760
        %424 = vmatpush.msra.mxu0 %v423
        %v425 = vand.u32 %v269, 4294901760
        %426 = vmatmul.f32.gmra.mxu0 %v425
        %v427 = vpop.f32.mrf.mxu0
        %v428 = vadd.f32 %v405, %v427
        %429 = vdwg.mxu0
        %v430 = vld [vmem:[#allocation2] sm:$0x1]
        %v431 = vsel %vm255, %v428, 0.0
        %v432 = vrot.slane %v431, 4
        %v433 = vadd.f32 %v431, %v432
        %v434 = vrot.slane %v433, 2
        %v435 = vadd.f32 %v433, %v434
        %v436 = vrot.slane %v435, 1
        %v437 = vadd.f32 %v435, %v436
        %v438 = vadd.f32 %v430, %v437
        %439 = vst [vmem:[#allocation2] sm:$0x1] %v438
        %p440 = scmp.eq.s32.totalorder %s19, 1
        // Predicated region
        $region45: #{tpu_custom_call.1} parent=31 // pred_check
          %p441 = pneg %p440
        $region46: #{tpu_custom_call.1} parent=31 // pred_check_branch
          %443 = sbr.rel (%p441) target = $region48
        $region47: #{tpu_custom_call.1} parent=31 // pred_region
          %v444 = vrot.slane %v244, 6
          %v445 = vsub.s32 %v244, %v444
          %v446 = vrot.slane %v445, 1
          %v447 = vmul.u32 %v445, %v446
          %v448 = vcvt.s32.f32 %v447
          %v449 = vld [vmem:[#allocation2] sm:$0x1]
          %v450 = vrcp.pop %v448
          %v451 = vmul.f32 %v448, %v450
          %v452 = vsub.f32 1.0, %v451
          %v453 = vmul.f32 %v450, %v452
          %v454 = vadd.f32 %v450, %v453
          %vm455 = vweird.f32 %v448
          %vm456 = vweird.f32 %v450
          %vm457 = vmor %vm455, %vm456
          %v458 = vsel %vm457, %v450, %v454
          %v459 = vand.u32 2147483647, %v448
          %vm460 = vcmp.eq.f32.partialorder %v459, 8.507059e+37
          %v461 = vand.u32 %v448, 2147483648
          %v462 = vor.u32 1.1754944e-38, %v461
          %v463 = vsel %vm460, %v462, %v458
          %465 = vst [vmem:[#allocation1] sm:$0xff] %v463
          %s466 = scalar_lea.vmem [#allocation1], 2
          %v467 = vld [vmem:[%s466] ss:$9 sm:$0xff]
          %v469 = vmul.f32 %v449, %v467
          %470 = vxpose.xlu0.b32.start [1/16] %v469, 128
          %471 = vxpose.xlu0.b32.cont [2/16] 0.0, 128
          %472 = vxpose.xlu0.b32.cont [3/16] 0.0, 128
          %473 = vxpose.xlu0.b32.cont [4/16] 0.0, 128
          %474 = vxpose.xlu0.b32.cont [5/16] 0.0, 128
          %475 = vxpose.xlu0.b32.cont [6/16] 0.0, 128
          %476 = vxpose.xlu0.b32.cont [7/16] 0.0, 128
          %477 = vxpose.xlu0.b32.cont [8/16] 0.0, 128
          %478 = vxpose.xlu0.b32.cont [9/16] 0.0, 128
          %479 = vxpose.xlu0.b32.cont [10/16] 0.0, 128
          %480 = vxpose.xlu0.b32.cont [11/16] 0.0, 128
          %481 = vxpose.xlu0.b32.cont [12/16] 0.0, 128
          %482 = vxpose.xlu0.b32.cont [13/16] 0.0, 128
          %483 = vxpose.xlu0.b32.cont [14/16] 0.0, 128
          %484 = vxpose.xlu0.b32.cont [15/16] 0.0, 128
          %485 = vxpose.xlu0.b32.end [16/16] 0.0, 128
          %v486 = vpop.trf.xlu0
          %v487 = vpop.trf.xlu0
          %v488 = vpop.trf.xlu0
          %v489 = vpop.trf.xlu0
          %v490 = vpop.trf.xlu0
          %v491 = vpop.trf.xlu0
          %v492 = vpop.trf.xlu0
          %v493 = vpop.trf.xlu0
          %v494 = vpop.trf.xlu0
          %v495 = vpop.trf.xlu0
          %v496 = vpop.trf.xlu0
          %v497 = vpop.trf.xlu0
          %v498 = vpop.trf.xlu0
          %v499 = vpop.trf.xlu0
          %v500 = vpop.trf.xlu0
          %v501 = vpop.trf.xlu0
          %503 = vset.pattern.permute.xlu0 0
          %504 = vperm.xlu0 %503, %v486
          %v505 = vpop.permute.xlu0 %504
          %508 = vset.pattern.permute.xlu0 0
          %509 = vperm.xlu0 %508, %v487
          %v510 = vpop.permute.xlu0 %509
          %513 = vset.pattern.permute.xlu0 0
          %514 = vperm.xlu0 %513, %v488
          %v515 = vpop.permute.xlu0 %514
          %518 = vset.pattern.permute.xlu0 0
          %519 = vperm.xlu0 %518, %v489
          %v520 = vpop.permute.xlu0 %519
          %523 = vset.pattern.permute.xlu0 0
          %524 = vperm.xlu0 %523, %v490
          %v525 = vpop.permute.xlu0 %524
          %528 = vset.pattern.permute.xlu0 0
          %529 = vperm.xlu0 %528, %v491
          %v530 = vpop.permute.xlu0 %529
          %533 = vset.pattern.permute.xlu0 0
          %534 = vperm.xlu0 %533, %v492
          %v535 = vpop.permute.xlu0 %534
          %538 = vset.pattern.permute.xlu0 0
          %539 = vperm.xlu0 %538, %v493
          %v540 = vpop.permute.xlu0 %539
          %543 = vset.pattern.permute.xlu0 0
          %544 = vperm.xlu0 %543, %v494
          %v545 = vpop.permute.xlu0 %544
          %548 = vset.pattern.permute.xlu0 0
          %549 = vperm.xlu0 %548, %v495
          %v550 = vpop.permute.xlu0 %549
          %553 = vset.pattern.permute.xlu0 0
          %554 = vperm.xlu0 %553, %v496
          %v555 = vpop.permute.xlu0 %554
          %558 = vset.pattern.permute.xlu0 0
          %559 = vperm.xlu0 %558, %v497
          %v560 = vpop.permute.xlu0 %559
          %563 = vset.pattern.permute.xlu0 0
          %564 = vperm.xlu0 %563, %v498
          %v565 = vpop.permute.xlu0 %564
          %568 = vset.pattern.permute.xlu0 0
          %569 = vperm.xlu0 %568, %v499
          %v570 = vpop.permute.xlu0 %569
          %573 = vset.pattern.permute.xlu0 0
          %574 = vperm.xlu0 %573, %v500
          %v575 = vpop.permute.xlu0 %574
          %578 = vset.pattern.permute.xlu0 0
          %579 = vperm.xlu0 %578, %v501
          %v580 = vpop.permute.xlu0 %579
          %v583 = vperm.slane %v469, 0
          %v585 = vsub.f32 %v505, %v583
          %v586 = vsub.f32 %v510, %v583
          %v587 = vsub.f32 %v515, %v583
          %v588 = vsub.f32 %v520, %v583
          %v589 = vsub.f32 %v525, %v583
          %v590 = vsub.f32 %v530, %v583
          %v591 = vsub.f32 %v535, %v583
          %v592 = vsub.f32 %v540, %v583
          %v593 = vsub.f32 %v545, %v583
          %v594 = vsub.f32 %v550, %v583
          %v595 = vsub.f32 %v555, %v583
          %v596 = vsub.f32 %v560, %v583
          %v597 = vsub.f32 %v565, %v583
          %v598 = vsub.f32 %v570, %v583
          %v599 = vsub.f32 %v575, %v583
          %v600 = vsub.f32 %v580, %v583
          %v601 = vmul.f32 %v585, %v585
          %v602 = vmul.f32 %v586, %v586
          %v603 = vmul.f32 %v587, %v587
          %v604 = vmul.f32 %v588, %v588
          %v605 = vmul.f32 %v589, %v589
          %v606 = vmul.f32 %v590, %v590
          %v607 = vmul.f32 %v591, %v591
          %v608 = vmul.f32 %v592, %v592
          %v609 = vmul.f32 %v593, %v593
          %v610 = vmul.f32 %v594, %v594
          %v611 = vmul.f32 %v595, %v595
          %v612 = vmul.f32 %v596, %v596
          %v613 = vmul.f32 %v597, %v597
          %v614 = vmul.f32 %v598, %v598
          %v615 = vmul.f32 %v599, %v599
          %v616 = vmul.f32 %v600, %v600
          %v617 = vadd.f32 %v601, 1e-10
          %v618 = vadd.f32 %v602, 1e-10
          %v619 = vadd.f32 %v603, 1e-10
          %v620 = vadd.f32 %v604, 1e-10
          %v621 = vadd.f32 %v605, 1e-10
          %v622 = vadd.f32 %v606, 1e-10
          %v623 = vadd.f32 %v607, 1e-10
          %v624 = vadd.f32 %v608, 1e-10
          %v625 = vadd.f32 %v609, 1e-10
          %v626 = vadd.f32 %v610, 1e-10
          %v627 = vadd.f32 %v611, 1e-10
          %v628 = vadd.f32 %v612, 1e-10
          %v629 = vadd.f32 %v613, 1e-10
          %v630 = vadd.f32 %v614, 1e-10
          %v631 = vadd.f32 %v615, 1e-10
          %v632 = vadd.f32 %v616, 1e-10
          %v633 = vrsqrt.pop %v617
          %v634 = vmul.f32 %v633, %v617
          %v635 = vmul.f32 %v634, %v633
          %v636 = vmul.f32 0.5, %v635
          %v637 = vsub.f32 1.5, %v636
          %v638 = vmul.f32 %v633, %v637
          %v639 = vmul.f32 %v617, %v638
          %vm640 = vcmp.eq.f32.partialorder %v617, inf
          %v641 = vsel %vm640, %v617, %v639
          %vm642 = vcmp.eq.f32.partialorder %v617, 0.0
          %v643 = vand.u32 %v617, 2147483648
          %v644 = vsel %vm642, %v643, %v641
          %v645 = vrsqrt.pop %v618
          %v646 = vmul.f32 %v645, %v618
          %v647 = vmul.f32 %v646, %v645
          %v648 = vmul.f32 0.5, %v647
          %v649 = vsub.f32 1.5, %v648
          %v650 = vmul.f32 %v645, %v649
          %v651 = vmul.f32 %v618, %v650
          %vm652 = vcmp.eq.f32.partialorder %v618, inf
          %v653 = vsel %vm652, %v618, %v651
          %vm654 = vcmp.eq.f32.partialorder %v618, 0.0
          %v655 = vand.u32 %v618, 2147483648
          %v656 = vsel %vm654, %v655, %v653
          %v657 = vrsqrt.pop %v619
          %v658 = vmul.f32 %v657, %v619
          %v659 = vmul.f32 %v658, %v657
          %v660 = vmul.f32 0.5, %v659
          %v661 = vsub.f32 1.5, %v660
          %v662 = vmul.f32 %v657, %v661
          %v663 = vmul.f32 %v619, %v662
          %vm664 = vcmp.eq.f32.partialorder %v619, inf
          %v665 = vsel %vm664, %v619, %v663
          %vm666 = vcmp.eq.f32.partialorder %v619, 0.0
          %v667 = vand.u32 %v619, 2147483648
          %v668 = vsel %vm666, %v667, %v665
          %v669 = vrsqrt.pop %v620
          %v670 = vmul.f32 %v669, %v620
          %v671 = vmul.f32 %v670, %v669
          %v672 = vmul.f32 0.5, %v671
          %v673 = vsub.f32 1.5, %v672
          %v674 = vmul.f32 %v669, %v673
          %v675 = vmul.f32 %v620, %v674
          %vm676 = vcmp.eq.f32.partialorder %v620, inf
          %v677 = vsel %vm676, %v620, %v675
          %vm678 = vcmp.eq.f32.partialorder %v620, 0.0
          %v679 = vand.u32 %v620, 2147483648
          %v680 = vsel %vm678, %v679, %v677
          %v681 = vrsqrt.pop %v621
          %v682 = vmul.f32 %v681, %v621
          %v683 = vmul.f32 %v682, %v681
          %v684 = vmul.f32 0.5, %v683
          %v685 = vsub.f32 1.5, %v684
          %v686 = vmul.f32 %v681, %v685
          %v687 = vmul.f32 %v621, %v686
          %vm688 = vcmp.eq.f32.partialorder %v621, inf
          %v689 = vsel %vm688, %v621, %v687
          %vm690 = vcmp.eq.f32.partialorder %v621, 0.0
          %v691 = vand.u32 %v621, 2147483648
          %v692 = vsel %vm690, %v691, %v689
          %v693 = vrsqrt.pop %v622
          %v694 = vmul.f32 %v693, %v622
          %v695 = vmul.f32 %v694, %v693
          %v696 = vmul.f32 0.5, %v695
          %v697 = vsub.f32 1.5, %v696
          %v698 = vmul.f32 %v693, %v697
          %v699 = vmul.f32 %v622, %v698
          %vm700 = vcmp.eq.f32.partialorder %v622, inf
          %v701 = vsel %vm700, %v622, %v699
          %vm702 = vcmp.eq.f32.partialorder %v622, 0.0
          %v703 = vand.u32 %v622, 2147483648
          %v704 = vsel %vm702, %v703, %v701
          %v705 = vrsqrt.pop %v623
          %v706 = vmul.f32 %v705, %v623
          %v707 = vmul.f32 %v706, %v705
          %v708 = vmul.f32 0.5, %v707
          %v709 = vsub.f32 1.5, %v708
          %v710 = vmul.f32 %v705, %v709
          %v711 = vmul.f32 %v623, %v710
          %vm712 = vcmp.eq.f32.partialorder %v623, inf
          %v713 = vsel %vm712, %v623, %v711
          %vm714 = vcmp.eq.f32.partialorder %v623, 0.0
          %v715 = vand.u32 %v623, 2147483648
          %v716 = vsel %vm714, %v715, %v713
          %v717 = vrsqrt.pop %v624
          %v718 = vmul.f32 %v717, %v624
          %v719 = vmul.f32 %v718, %v717
          %v720 = vmul.f32 0.5, %v719
          %v721 = vsub.f32 1.5, %v720
          %v722 = vmul.f32 %v717, %v721
          %v723 = vmul.f32 %v624, %v722
          %vm724 = vcmp.eq.f32.partialorder %v624, inf
          %v725 = vsel %vm724, %v624, %v723
          %vm726 = vcmp.eq.f32.partialorder %v624, 0.0
          %v727 = vand.u32 %v624, 2147483648
          %v728 = vsel %vm726, %v727, %v725
          %v729 = vrsqrt.pop %v625
          %v730 = vmul.f32 %v729, %v625
          %v731 = vmul.f32 %v730, %v729
          %v732 = vmul.f32 0.5, %v731
          %v733 = vsub.f32 1.5, %v732
          %v734 = vmul.f32 %v729, %v733
          %v735 = vmul.f32 %v625, %v734
          %vm736 = vcmp.eq.f32.partialorder %v625, inf
          %v737 = vsel %vm736, %v625, %v735
          %vm738 = vcmp.eq.f32.partialorder %v625, 0.0
          %v739 = vand.u32 %v625, 2147483648
          %v740 = vsel %vm738, %v739, %v737
          %v741 = vrsqrt.pop %v626
          %v742 = vmul.f32 %v741, %v626
          %v743 = vmul.f32 %v742, %v741
          %v744 = vmul.f32 0.5, %v743
          %v745 = vsub.f32 1.5, %v744
          %v746 = vmul.f32 %v741, %v745
          %v747 = vmul.f32 %v626, %v746
          %vm748 = vcmp.eq.f32.partialorder %v626, inf
          %v749 = vsel %vm748, %v626, %v747
          %vm750 = vcmp.eq.f32.partialorder %v626, 0.0
          %v751 = vand.u32 %v626, 2147483648
          %v752 = vsel %vm750, %v751, %v749
          %v753 = vrsqrt.pop %v627
          %v754 = vmul.f32 %v753, %v627
          %v755 = vmul.f32 %v754, %v753
          %v756 = vmul.f32 0.5, %v755
          %v757 = vsub.f32 1.5, %v756
          %v758 = vmul.f32 %v753, %v757
          %v759 = vmul.f32 %v627, %v758
          %vm760 = vcmp.eq.f32.partialorder %v627, inf
          %v761 = vsel %vm760, %v627, %v759
          %vm762 = vcmp.eq.f32.partialorder %v627, 0.0
          %v763 = vand.u32 %v627, 2147483648
          %v764 = vsel %vm762, %v763, %v761
          %v765 = vrsqrt.pop %v628
          %v766 = vmul.f32 %v765, %v628
          %v767 = vmul.f32 %v766, %v765
          %v768 = vmul.f32 0.5, %v767
          %v769 = vsub.f32 1.5, %v768
          %v770 = vmul.f32 %v765, %v769
          %v771 = vmul.f32 %v628, %v770
          %vm772 = vcmp.eq.f32.partialorder %v628, inf
          %v773 = vsel %vm772, %v628, %v771
          %vm774 = vcmp.eq.f32.partialorder %v628, 0.0
          %v775 = vand.u32 %v628, 2147483648
          %v776 = vsel %vm774, %v775, %v773
          %v777 = vrsqrt.pop %v629
          %v778 = vmul.f32 %v777, %v629
          %v779 = vmul.f32 %v778, %v777
          %v780 = vmul.f32 0.5, %v779
          %v781 = vsub.f32 1.5, %v780
          %v782 = vmul.f32 %v777, %v781
          %v783 = vmul.f32 %v629, %v782
          %vm784 = vcmp.eq.f32.partialorder %v629, inf
          %v785 = vsel %vm784, %v629, %v783
          %vm786 = vcmp.eq.f32.partialorder %v629, 0.0
          %v787 = vand.u32 %v629, 2147483648
          %v788 = vsel %vm786, %v787, %v785
          %v789 = vrsqrt.pop %v630
          %v790 = vmul.f32 %v789, %v630
          %v791 = vmul.f32 %v790, %v789
          %v792 = vmul.f32 0.5, %v791
          %v793 = vsub.f32 1.5, %v792
          %v794 = vmul.f32 %v789, %v793
          %v795 = vmul.f32 %v630, %v794
          %vm796 = vcmp.eq.f32.partialorder %v630, inf
          %v797 = vsel %vm796, %v630, %v795
          %vm798 = vcmp.eq.f32.partialorder %v630, 0.0
          %v799 = vand.u32 %v630, 2147483648
          %v800 = vsel %vm798, %v799, %v797
          %v801 = vrsqrt.pop %v631
          %v802 = vmul.f32 %v801, %v631
          %v803 = vmul.f32 %v802, %v801
          %v804 = vmul.f32 0.5, %v803
          %v805 = vsub.f32 1.5, %v804
          %v806 = vmul.f32 %v801, %v805
          %v807 = vmul.f32 %v631, %v806
          %vm808 = vcmp.eq.f32.partialorder %v631, inf
          %v809 = vsel %vm808, %v631, %v807
          %vm810 = vcmp.eq.f32.partialorder %v631, 0.0
          %v811 = vand.u32 %v631, 2147483648
          %v812 = vsel %vm810, %v811, %v809
          %v813 = vrsqrt.pop %v632
          %v814 = vmul.f32 %v813, %v632
          %v815 = vmul.f32 %v814, %v813
          %v816 = vmul.f32 0.5, %v815
          %v817 = vsub.f32 1.5, %v816
          %v818 = vmul.f32 %v813, %v817
          %v819 = vmul.f32 %v632, %v818
          %vm820 = vcmp.eq.f32.partialorder %v632, inf
          %v821 = vsel %vm820, %v632, %v819
          %vm822 = vcmp.eq.f32.partialorder %v632, 0.0
          %v823 = vand.u32 %v632, 2147483648
          %v824 = vsel %vm822, %v823, %v821
          %v825 = vld [vmem:[%s2] sm:$0x1]
          %826 = vxpose.xlu0.b32.start [1/16] %v825, 128
          %827 = vxpose.xlu0.b32.cont [2/16] 0.0, 128
          %828 = vxpose.xlu0.b32.cont [3/16] 0.0, 128
          %829 = vxpose.xlu0.b32.cont [4/16] 0.0, 128
          %830 = vxpose.xlu0.b32.cont [5/16] 0.0, 128
          %831 = vxpose.xlu0.b32.cont [6/16] 0.0, 128
          %832 = vxpose.xlu0.b32.cont [7/16] 0.0, 128
          %833 = vxpose.xlu0.b32.cont [8/16] 0.0, 128
          %834 = vxpose.xlu0.b32.cont [9/16] 0.0, 128
          %835 = vxpose.xlu0.b32.cont [10/16] 0.0, 128
          %836 = vxpose.xlu0.b32.cont [11/16] 0.0, 128
          %837 = vxpose.xlu0.b32.cont [12/16] 0.0, 128
          %838 = vxpose.xlu0.b32.cont [13/16] 0.0, 128
          %839 = vxpose.xlu0.b32.cont [14/16] 0.0, 128
          %840 = vxpose.xlu0.b32.cont [15/16] 0.0, 128
          %841 = vxpose.xlu0.b32.end [16/16] 0.0, 128
          %v842 = vpop.trf.xlu0
          %v843 = vpop.trf.xlu0
          %v844 = vpop.trf.xlu0
          %v845 = vpop.trf.xlu0
          %v846 = vpop.trf.xlu0
          %v847 = vpop.trf.xlu0
          %v848 = vpop.trf.xlu0
          %v849 = vpop.trf.xlu0
          %v850 = vpop.trf.xlu0
          %v851 = vpop.trf.xlu0
          %v852 = vpop.trf.xlu0
          %v853 = vpop.trf.xlu0
          %v854 = vpop.trf.xlu0
          %v855 = vpop.trf.xlu0
          %v856 = vpop.trf.xlu0
          %v857 = vpop.trf.xlu0
          %859 = vset.pattern.permute.xlu0 0
          %860 = vperm.xlu0 %859, %v842
          %v861 = vpop.permute.xlu0 %860
          %864 = vset.pattern.permute.xlu0 0
          %865 = vperm.xlu0 %864, %v843
          %v866 = vpop.permute.xlu0 %865
          %869 = vset.pattern.permute.xlu0 0
          %870 = vperm.xlu0 %869, %v844
          %v871 = vpop.permute.xlu0 %870
          %874 = vset.pattern.permute.xlu0 0
          %875 = vperm.xlu0 %874, %v845
          %v876 = vpop.permute.xlu0 %875
          %879 = vset.pattern.permute.xlu0 0
          %880 = vperm.xlu0 %879, %v846
          %v881 = vpop.permute.xlu0 %880
          %884 = vset.pattern.permute.xlu0 0
          %885 = vperm.xlu0 %884, %v847
          %v886 = vpop.permute.xlu0 %885
          %889 = vset.pattern.permute.xlu0 0
          %890 = vperm.xlu0 %889, %v848
          %v891 = vpop.permute.xlu0 %890
          %894 = vset.pattern.permute.xlu0 0
          %895 = vperm.xlu0 %894, %v849
          %v896 = vpop.permute.xlu0 %895
          %899 = vset.pattern.permute.xlu0 0
          %900 = vperm.xlu0 %899, %v850
          %v901 = vpop.permute.xlu0 %900
          %904 = vset.pattern.permute.xlu0 0
          %905 = vperm.xlu0 %904, %v851
          %v906 = vpop.permute.xlu0 %905
          %909 = vset.pattern.permute.xlu0 0
          %910 = vperm.xlu0 %909, %v852
          %v911 = vpop.permute.xlu0 %910
          %914 = vset.pattern.permute.xlu0 0
          %915 = vperm.xlu0 %914, %v853
          %v916 = vpop.permute.xlu0 %915
          %919 = vset.pattern.permute.xlu0 0
          %920 = vperm.xlu0 %919, %v854
          %v921 = vpop.permute.xlu0 %920
          %924 = vset.pattern.permute.xlu0 0
          %925 = vperm.xlu0 %924, %v855
          %v926 = vpop.permute.xlu0 %925
          %929 = vset.pattern.permute.xlu0 0
          %930 = vperm.xlu0 %929, %v856
          %v931 = vpop.permute.xlu0 %930
          %934 = vset.pattern.permute.xlu0 0
          %935 = vperm.xlu0 %934, %v857
          %v936 = vpop.permute.xlu0 %935
          %v939 = vperm.slane %v825, 0
          %v941 = vsub.f32 %v861, %v939
          %v942 = vsub.f32 %v866, %v939
          %v943 = vsub.f32 %v871, %v939
          %v944 = vsub.f32 %v876, %v939
          %v945 = vsub.f32 %v881, %v939
          %v946 = vsub.f32 %v886, %v939
          %v947 = vsub.f32 %v891, %v939
          %v948 = vsub.f32 %v896, %v939
          %v949 = vsub.f32 %v901, %v939
          %v950 = vsub.f32 %v906, %v939
          %v951 = vsub.f32 %v911, %v939
          %v952 = vsub.f32 %v916, %v939
          %v953 = vsub.f32 %v921, %v939
          %v954 = vsub.f32 %v926, %v939
          %v955 = vsub.f32 %v931, %v939
          %v956 = vsub.f32 %v936, %v939
          %v957 = vmul.f32 %v941, %v941
          %v958 = vmul.f32 %v942, %v942
          %v959 = vmul.f32 %v943, %v943
          %v960 = vmul.f32 %v944, %v944
          %v961 = vmul.f32 %v945, %v945
          %v962 = vmul.f32 %v946, %v946
          %v963 = vmul.f32 %v947, %v947
          %v964 = vmul.f32 %v948, %v948
          %v965 = vmul.f32 %v949, %v949
          %v966 = vmul.f32 %v950, %v950
          %v967 = vmul.f32 %v951, %v951
          %v968 = vmul.f32 %v952, %v952
          %v969 = vmul.f32 %v953, %v953
          %v970 = vmul.f32 %v954, %v954
          %v971 = vmul.f32 %v955, %v955
          %v972 = vmul.f32 %v956, %v956
          %v973 = vadd.f32 %v957, 1e-10
          %v974 = vadd.f32 %v958, 1e-10
          %v975 = vadd.f32 %v959, 1e-10
          %v976 = vadd.f32 %v960, 1e-10
          %v977 = vadd.f32 %v961, 1e-10
          %v978 = vadd.f32 %v962, 1e-10
          %v979 = vadd.f32 %v963, 1e-10
          %v980 = vadd.f32 %v964, 1e-10
          %v981 = vadd.f32 %v965, 1e-10
          %v982 = vadd.f32 %v966, 1e-10
          %v983 = vadd.f32 %v967, 1e-10
          %v984 = vadd.f32 %v968, 1e-10
          %v985 = vadd.f32 %v969, 1e-10
          %v986 = vadd.f32 %v970, 1e-10
          %v987 = vadd.f32 %v971, 1e-10
          %v988 = vadd.f32 %v972, 1e-10
          %v989 = vrsqrt.pop %v973
          %v990 = vmul.f32 %v989, %v973
          %v991 = vmul.f32 %v990, %v989
          %v992 = vmul.f32 0.5, %v991
          %v993 = vsub.f32 1.5, %v992
          %v994 = vmul.f32 %v989, %v993
          %v995 = vmul.f32 %v973, %v994
          %vm996 = vcmp.eq.f32.partialorder %v973, inf
          %v997 = vsel %vm996, %v973, %v995
          %vm998 = vcmp.eq.f32.partialorder %v973, 0.0
          %v999 = vand.u32 %v973, 2147483648
          %v1000 = vsel %vm998, %v999, %v997
          %v1001 = vrsqrt.pop %v974
          %v1002 = vmul.f32 %v1001, %v974
          %v1003 = vmul.f32 %v1002, %v1001
          %v1004 = vmul.f32 0.5, %v1003
          %v1005 = vsub.f32 1.5, %v1004
          %v1006 = vmul.f32 %v1001, %v1005
          %v1007 = vmul.f32 %v974, %v1006
          %vm1008 = vcmp.eq.f32.partialorder %v974, inf
          %v1009 = vsel %vm1008, %v974, %v1007
          %vm1010 = vcmp.eq.f32.partialorder %v974, 0.0
          %v1011 = vand.u32 %v974, 2147483648
          %v1012 = vsel %vm1010, %v1011, %v1009
          %v1013 = vrsqrt.pop %v975
          %v1014 = vmul.f32 %v1013, %v975
          %v1015 = vmul.f32 %v1014, %v1013
          %v1016 = vmul.f32 0.5, %v1015
          %v1017 = vsub.f32 1.5, %v1016
          %v1018 = vmul.f32 %v1013, %v1017
          %v1019 = vmul.f32 %v975, %v1018
          %vm1020 = vcmp.eq.f32.partialorder %v975, inf
          %v1021 = vsel %vm1020, %v975, %v1019
          %vm1022 = vcmp.eq.f32.partialorder %v975, 0.0
          %v1023 = vand.u32 %v975, 2147483648
          %v1024 = vsel %vm1022, %v1023, %v1021
          %v1025 = vrsqrt.pop %v976
          %v1026 = vmul.f32 %v1025, %v976
          %v1027 = vmul.f32 %v1026, %v1025
          %v1028 = vmul.f32 0.5, %v1027
          %v1029 = vsub.f32 1.5, %v1028
          %v1030 = vmul.f32 %v1025, %v1029
          %v1031 = vmul.f32 %v976, %v1030
          %vm1032 = vcmp.eq.f32.partialorder %v976, inf
          %v1033 = vsel %vm1032, %v976, %v1031
          %vm1034 = vcmp.eq.f32.partialorder %v976, 0.0
          %v1035 = vand.u32 %v976, 2147483648
          %v1036 = vsel %vm1034, %v1035, %v1033
          %v1037 = vrsqrt.pop %v977
          %v1038 = vmul.f32 %v1037, %v977
          %v1039 = vmul.f32 %v1038, %v1037
          %v1040 = vmul.f32 0.5, %v1039
          %v1041 = vsub.f32 1.5, %v1040
          %v1042 = vmul.f32 %v1037, %v1041
          %v1043 = vmul.f32 %v977, %v1042
          %vm1044 = vcmp.eq.f32.partialorder %v977, inf
          %v1045 = vsel %vm1044, %v977, %v1043
          %vm1046 = vcmp.eq.f32.partialorder %v977, 0.0
          %v1047 = vand.u32 %v977, 2147483648
          %v1048 = vsel %vm1046, %v1047, %v1045
          %v1049 = vrsqrt.pop %v978
          %v1050 = vmul.f32 %v1049, %v978
          %v1051 = vmul.f32 %v1050, %v1049
          %v1052 = vmul.f32 0.5, %v1051
          %v1053 = vsub.f32 1.5, %v1052
          %v1054 = vmul.f32 %v1049, %v1053
          %v1055 = vmul.f32 %v978, %v1054
          %vm1056 = vcmp.eq.f32.partialorder %v978, inf
          %v1057 = vsel %vm1056, %v978, %v1055
          %vm1058 = vcmp.eq.f32.partialorder %v978, 0.0
          %v1059 = vand.u32 %v978, 2147483648
          %v1060 = vsel %vm1058, %v1059, %v1057
          %v1061 = vrsqrt.pop %v979
          %v1062 = vmul.f32 %v1061, %v979
          %v1063 = vmul.f32 %v1062, %v1061
          %v1064 = vmul.f32 0.5, %v1063
          %v1065 = vsub.f32 1.5, %v1064
          %v1066 = vmul.f32 %v1061, %v1065
          %v1067 = vmul.f32 %v979, %v1066
          %vm1068 = vcmp.eq.f32.partialorder %v979, inf
          %v1069 = vsel %vm1068, %v979, %v1067
          %vm1070 = vcmp.eq.f32.partialorder %v979, 0.0
          %v1071 = vand.u32 %v979, 2147483648
          %v1072 = vsel %vm1070, %v1071, %v1069
          %v1073 = vrsqrt.pop %v980
          %v1074 = vmul.f32 %v1073, %v980
          %v1075 = vmul.f32 %v1074, %v1073
          %v1076 = vmul.f32 0.5, %v1075
          %v1077 = vsub.f32 1.5, %v1076
          %v1078 = vmul.f32 %v1073, %v1077
          %v1079 = vmul.f32 %v980, %v1078
          %vm1080 = vcmp.eq.f32.partialorder %v980, inf
          %v1081 = vsel %vm1080, %v980, %v1079
          %vm1082 = vcmp.eq.f32.partialorder %v980, 0.0
          %v1083 = vand.u32 %v980, 2147483648
          %v1084 = vsel %vm1082, %v1083, %v1081
          %v1085 = vrsqrt.pop %v981
          %v1086 = vmul.f32 %v1085, %v981
          %v1087 = vmul.f32 %v1086, %v1085
          %v1088 = vmul.f32 0.5, %v1087
          %v1089 = vsub.f32 1.5, %v1088
          %v1090 = vmul.f32 %v1085, %v1089
          %v1091 = vmul.f32 %v981, %v1090
          %vm1092 = vcmp.eq.f32.partialorder %v981, inf
          %v1093 = vsel %vm1092, %v981, %v1091
          %vm1094 = vcmp.eq.f32.partialorder %v981, 0.0
          %v1095 = vand.u32 %v981, 2147483648
          %v1096 = vsel %vm1094, %v1095, %v1093
          %v1097 = vrsqrt.pop %v982
          %v1098 = vmul.f32 %v1097, %v982
          %v1099 = vmul.f32 %v1098, %v1097
          %v1100 = vmul.f32 0.5, %v1099
          %v1101 = vsub.f32 1.5, %v1100
          %v1102 = vmul.f32 %v1097, %v1101
          %v1103 = vmul.f32 %v982, %v1102
          %vm1104 = vcmp.eq.f32.partialorder %v982, inf
          %v1105 = vsel %vm1104, %v982, %v1103
          %vm1106 = vcmp.eq.f32.partialorder %v982, 0.0
          %v1107 = vand.u32 %v982, 2147483648
          %v1108 = vsel %vm1106, %v1107, %v1105
          %v1109 = vrsqrt.pop %v983
          %v1110 = vmul.f32 %v1109, %v983
          %v1111 = vmul.f32 %v1110, %v1109
          %v1112 = vmul.f32 0.5, %v1111
          %v1113 = vsub.f32 1.5, %v1112
          %v1114 = vmul.f32 %v1109, %v1113
          %v1115 = vmul.f32 %v983, %v1114
          %vm1116 = vcmp.eq.f32.partialorder %v983, inf
          %v1117 = vsel %vm1116, %v983, %v1115
          %vm1118 = vcmp.eq.f32.partialorder %v983, 0.0
          %v1119 = vand.u32 %v983, 2147483648
          %v1120 = vsel %vm1118, %v1119, %v1117
          %v1121 = vrsqrt.pop %v984
          %v1122 = vmul.f32 %v1121, %v984
          %v1123 = vmul.f32 %v1122, %v1121
          %v1124 = vmul.f32 0.5, %v1123
          %v1125 = vsub.f32 1.5, %v1124
          %v1126 = vmul.f32 %v1121, %v1125
          %v1127 = vmul.f32 %v984, %v1126
          %vm1128 = vcmp.eq.f32.partialorder %v984, inf
          %v1129 = vsel %vm1128, %v984, %v1127
          %vm1130 = vcmp.eq.f32.partialorder %v984, 0.0
          %v1131 = vand.u32 %v984, 2147483648
          %v1132 = vsel %vm1130, %v1131, %v1129
          %v1133 = vrsqrt.pop %v985
          %v1134 = vmul.f32 %v1133, %v985
          %v1135 = vmul.f32 %v1134, %v1133
          %v1136 = vmul.f32 0.5, %v1135
          %v1137 = vsub.f32 1.5, %v1136
          %v1138 = vmul.f32 %v1133, %v1137
          %v1139 = vmul.f32 %v985, %v1138
          %vm1140 = vcmp.eq.f32.partialorder %v985, inf
          %v1141 = vsel %vm1140, %v985, %v1139
          %vm1142 = vcmp.eq.f32.partialorder %v985, 0.0
          %v1143 = vand.u32 %v985, 2147483648
          %v1144 = vsel %vm1142, %v1143, %v1141
          %v1145 = vrsqrt.pop %v986
          %v1146 = vmul.f32 %v1145, %v986
          %v1147 = vmul.f32 %v1146, %v1145
          %v1148 = vmul.f32 0.5, %v1147
          %v1149 = vsub.f32 1.5, %v1148
          %v1150 = vmul.f32 %v1145, %v1149
          %v1151 = vmul.f32 %v986, %v1150
          %vm1152 = vcmp.eq.f32.partialorder %v986, inf
          %v1153 = vsel %vm1152, %v986, %v1151
          %vm1154 = vcmp.eq.f32.partialorder %v986, 0.0
          %v1155 = vand.u32 %v986, 2147483648
          %v1156 = vsel %vm1154, %v1155, %v1153
          %v1157 = vrsqrt.pop %v987
          %v1158 = vmul.f32 %v1157, %v987
          %v1159 = vmul.f32 %v1158, %v1157
          %v1160 = vmul.f32 0.5, %v1159
          %v1161 = vsub.f32 1.5, %v1160
          %v1162 = vmul.f32 %v1157, %v1161
          %v1163 = vmul.f32 %v987, %v1162
          %vm1164 = vcmp.eq.f32.partialorder %v987, inf
          %v1165 = vsel %vm1164, %v987, %v1163
          %vm1166 = vcmp.eq.f32.partialorder %v987, 0.0
          %v1167 = vand.u32 %v987, 2147483648
          %v1168 = vsel %vm1166, %v1167, %v1165
          %v1169 = vrsqrt.pop %v988
          %v1170 = vmul.f32 %v1169, %v988
          %v1171 = vmul.f32 %v1170, %v1169
          %v1172 = vmul.f32 0.5, %v1171
          %v1173 = vsub.f32 1.5, %v1172
          %v1174 = vmul.f32 %v1169, %v1173
          %v1175 = vmul.f32 %v988, %v1174
          %vm1176 = vcmp.eq.f32.partialorder %v988, inf
          %v1177 = vsel %vm1176, %v988, %v1175
          %vm1178 = vcmp.eq.f32.partialorder %v988, 0.0
          %v1179 = vand.u32 %v988, 2147483648
          %v1180 = vsel %vm1178, %v1179, %v1177
          %v1181 = vlaneseq
          %v1182 = vand.u32 %v1181, 127
          %vm1183 = vcmp.lt.s32.totalorder %v1182, 8
          %v1184 = vsel %vm1183, 1, 0
          %v1185 = vcvt.s32.f32 %v1184
          %1186 = vxpose.xlu0.b32.start [1/16] %v1185, 128
          %1187 = vxpose.xlu0.b32.cont [2/16] 0.0, 128
          %1188 = vxpose.xlu0.b32.cont [3/16] 0.0, 128
          %1189 = vxpose.xlu0.b32.cont [4/16] 0.0, 128
          %1190 = vxpose.xlu0.b32.cont [5/16] 0.0, 128
          %1191 = vxpose.xlu0.b32.cont [6/16] 0.0, 128
          %1192 = vxpose.xlu0.b32.cont [7/16] 0.0, 128
          %1193 = vxpose.xlu0.b32.cont [8/16] 0.0, 128
          %1194 = vxpose.xlu0.b32.cont [9/16] 0.0, 128
          %1195 = vxpose.xlu0.b32.cont [10/16] 0.0, 128
          %1196 = vxpose.xlu0.b32.cont [11/16] 0.0, 128
          %1197 = vxpose.xlu0.b32.cont [12/16] 0.0, 128
          %1198 = vxpose.xlu0.b32.cont [13/16] 0.0, 128
          %1199 = vxpose.xlu0.b32.cont [14/16] 0.0, 128
          %1200 = vxpose.xlu0.b32.cont [15/16] 0.0, 128
          %1201 = vxpose.xlu0.b32.end [16/16] 0.0, 128
          %v1202 = vpop.trf.xlu0
          %v1203 = vpop.trf.xlu0
          %v1204 = vpop.trf.xlu0
          %v1205 = vpop.trf.xlu0
          %v1206 = vpop.trf.xlu0
          %v1207 = vpop.trf.xlu0
          %v1208 = vpop.trf.xlu0
          %v1209 = vpop.trf.xlu0
          %v1210 = vpop.trf.xlu0
          %v1211 = vpop.trf.xlu0
          %v1212 = vpop.trf.xlu0
          %v1213 = vpop.trf.xlu0
          %v1214 = vpop.trf.xlu0
          %v1215 = vpop.trf.xlu0
          %v1216 = vpop.trf.xlu0
          %v1217 = vpop.trf.xlu0
          %1219 = vset.pattern.permute.xlu0 0
          %1220 = vperm.xlu0 %1219, %v1202
          %v1221 = vpop.permute.xlu0 %1220
          %1224 = vset.pattern.permute.xlu0 0
          %1225 = vperm.xlu0 %1224, %v1203
          %v1226 = vpop.permute.xlu0 %1225
          %1229 = vset.pattern.permute.xlu0 0
          %1230 = vperm.xlu0 %1229, %v1204
          %v1231 = vpop.permute.xlu0 %1230
          %1234 = vset.pattern.permute.xlu0 0
          %1235 = vperm.xlu0 %1234, %v1205
          %v1236 = vpop.permute.xlu0 %1235
          %1239 = vset.pattern.permute.xlu0 0
          %1240 = vperm.xlu0 %1239, %v1206
          %v1241 = vpop.permute.xlu0 %1240
          %1244 = vset.pattern.permute.xlu0 0
          %1245 = vperm.xlu0 %1244, %v1207
          %v1246 = vpop.permute.xlu0 %1245
          %1249 = vset.pattern.permute.xlu0 0
          %1250 = vperm.xlu0 %1249, %v1208
          %v1251 = vpop.permute.xlu0 %1250
          %1254 = vset.pattern.permute.xlu0 0
          %1255 = vperm.xlu0 %1254, %v1209
          %v1256 = vpop.permute.xlu0 %1255
          %1259 = vset.pattern.permute.xlu0 0
          %1260 = vperm.xlu0 %1259, %v1210
          %v1261 = vpop.permute.xlu0 %1260
          %1264 = vset.pattern.permute.xlu0 0
          %1265 = vperm.xlu0 %1264, %v1211
          %v1266 = vpop.permute.xlu0 %1265
          %1269 = vset.pattern.permute.xlu0 0
          %1270 = vperm.xlu0 %1269, %v1212
          %v1271 = vpop.permute.xlu0 %1270
          %1274 = vset.pattern.permute.xlu0 0
          %1275 = vperm.xlu0 %1274, %v1213
          %v1276 = vpop.permute.xlu0 %1275
          %1279 = vset.pattern.permute.xlu0 0
          %1280 = vperm.xlu0 %1279, %v1214
          %v1281 = vpop.permute.xlu0 %1280
          %1284 = vset.pattern.permute.xlu0 0
          %1285 = vperm.xlu0 %1284, %v1215
          %v1286 = vpop.permute.xlu0 %1285
          %1289 = vset.pattern.permute.xlu0 0
          %1290 = vperm.xlu0 %1289, %v1216
          %v1291 = vpop.permute.xlu0 %1290
          %1294 = vset.pattern.permute.xlu0 0
          %1295 = vperm.xlu0 %1294, %v1217
          %v1296 = vpop.permute.xlu0 %1295
          %v1298 = vmul.f32 %v1221, %v1185
          %v1299 = vmul.f32 %v1226, %v1185
          %v1300 = vmul.f32 %v1231, %v1185
          %v1301 = vmul.f32 %v1236, %v1185
          %v1302 = vmul.f32 %v1241, %v1185
          %v1303 = vmul.f32 %v1246, %v1185
          %v1304 = vmul.f32 %v1251, %v1185
          %v1305 = vmul.f32 %v1256, %v1185
          %v1306 = vmul.f32 %v1261, %v1185
          %v1307 = vmul.f32 %v1266, %v1185
          %v1308 = vmul.f32 %v1271, %v1185
          %v1309 = vmul.f32 %v1276, %v1185
          %v1310 = vmul.f32 %v1281, %v1185
          %v1311 = vmul.f32 %v1286, %v1185
          %v1312 = vmul.f32 %v1291, %v1185
          %v1313 = vmul.f32 %v1296, %v1185
          %v1314 = vsub.f32 %v644, %v1000
          %v1315 = vsub.f32 %v656, %v1012
          %v1316 = vsub.f32 %v668, %v1024
          %v1317 = vsub.f32 %v680, %v1036
          %v1318 = vsub.f32 %v692, %v1048
          %v1319 = vsub.f32 %v704, %v1060
          %v1320 = vsub.f32 %v716, %v1072
          %v1321 = vsub.f32 %v728, %v1084
          %v1322 = vsub.f32 %v740, %v1096
          %v1323 = vsub.f32 %v752, %v1108
          %v1324 = vsub.f32 %v764, %v1120
          %v1325 = vsub.f32 %v776, %v1132
          %v1326 = vsub.f32 %v788, %v1144
          %v1327 = vsub.f32 %v800, %v1156
          %v1328 = vsub.f32 %v812, %v1168
          %v1329 = vsub.f32 %v824, %v1180
          %v1330 = vmul.f32 %v1314, %v1314
          %v1331 = vmul.f32 %v1315, %v1315
          %v1332 = vmul.f32 %v1316, %v1316
          %v1333 = vmul.f32 %v1317, %v1317
          %v1334 = vmul.f32 %v1318, %v1318
          %v1335 = vmul.f32 %v1319, %v1319
          %v1336 = vmul.f32 %v1320, %v1320
          %v1337 = vmul.f32 %v1321, %v1321
          %v1338 = vmul.f32 %v1322, %v1322
          %v1339 = vmul.f32 %v1323, %v1323
          %v1340 = vmul.f32 %v1324, %v1324
          %v1341 = vmul.f32 %v1325, %v1325
          %v1342 = vmul.f32 %v1326, %v1326
          %v1343 = vmul.f32 %v1327, %v1327
          %v1344 = vmul.f32 %v1328, %v1328
          %v1345 = vmul.f32 %v1329, %v1329
          %v1346 = vmul.f32 %v1298, %v1330
          %v1347 = vmul.f32 %v1299, %v1331
          %v1348 = vmul.f32 %v1300, %v1332
          %v1349 = vmul.f32 %v1301, %v1333
          %v1350 = vmul.f32 %v1302, %v1334
          %v1351 = vmul.f32 %v1303, %v1335
          %v1352 = vmul.f32 %v1304, %v1336
          %v1353 = vmul.f32 %v1305, %v1337
          %v1354 = vmul.f32 %v1306, %v1338
          %v1355 = vmul.f32 %v1307, %v1339
          %v1356 = vmul.f32 %v1308, %v1340
          %v1357 = vmul.f32 %v1309, %v1341
          %v1358 = vmul.f32 %v1310, %v1342
          %v1359 = vmul.f32 %v1311, %v1343
          %v1360 = vmul.f32 %v1312, %v1344
          %v1361 = vmul.f32 %v1313, %v1345
          %v1362 = vadd.f32 %v1346, %v1347
          %v1363 = vadd.f32 %v1362, %v1348
          %v1364 = vadd.f32 %v1363, %v1349
          %v1365 = vadd.f32 %v1364, %v1350
          %v1366 = vadd.f32 %v1365, %v1351
          %v1367 = vadd.f32 %v1366, %v1352
          %v1368 = vadd.f32 %v1367, %v1353
          %v1369 = vadd.f32 %v1368, %v1354
          %v1370 = vadd.f32 %v1369, %v1355
          %v1371 = vadd.f32 %v1370, %v1356
          %v1372 = vadd.f32 %v1371, %v1357
          %v1373 = vadd.f32 %v1372, %v1358
          %v1374 = vadd.f32 %v1373, %v1359
          %v1375 = vadd.f32 %v1374, %v1360
          %v1376 = vadd.f32 %v1375, %v1361
          %1377 = vadd.xlane.f32.xlu0 %v1376
          %v1378 = vpop.xlane.xlu0 %1377
          %v1379 = vrot.slane %v1378, 4
          %v1380 = vadd.f32 %v1378, %v1379
          %v1381 = vrot.slane %v1380, 2
          %v1382 = vadd.f32 %v1380, %v1381
          %v1383 = vrot.slane %v1382, 1
          %v1384 = vadd.f32 %v1382, %v1383
          %s1385 = vtos %v1384
          %v1386 = vstv %s1385
          %v1387 = vmul.f32 %v1386, 0.015625
          %vm1388 = vcmask 0
          %1389 = vst.msk [vmem:[#allocation8] sm:$0x1] %vm1388, %v1387
        $region48: #{tpu_custom_call.1} parent=31 // pred_fallthru
          _
        // Predicated region
        $region49: #{tpu_custom_call.1} parent=31 // pred_check
          %p1390 = pneg %p100
        $region50: #{tpu_custom_call.1} parent=31 // pred_check_branch
          %1392 = sbr.rel (%p1390) target = $region52
        $region51: #{tpu_custom_call.1} parent=31 // pred_region
          %1394 = vsyncadd [#allocation5], 0
          %s1396 = sshll.u32 [#allocation8], 4
          %s1397 = int_to_ptr.vmem [resolvable:$true] %s1396
          %s1398 = sshll.u32 %s3, 4
          %s1399 = int_to_ptr.hbm [resolvable:$true] %s1398
          %1401 = dma.vmem_to_hbm [thread:$0]  %s1397, 16, %s1399, [#allocation5]
        $region52: #{tpu_custom_call.1} parent=31 // pred_fallthru
          _
        // Predicated region
        $region53: #{tpu_custom_call.1} parent=31 // pred_check
          %p1402 = pneg %p100
        $region54: #{tpu_custom_call.1} parent=31 // pred_check_branch
          %1404 = sbr.rel (%p1402) target = $region56
        $region55: #{tpu_custom_call.1} parent=31 // pred_region
          %1406 = dma.done [#allocation5], 16
        $region56: #{tpu_custom_call.1} parent=31 // pred_fallthru
          _
      $region32: #{tpu_custom_call.1} parent=5 // pred_fallthru
        _
      %p1407 = scmp.le.s32.totalorder 2, %s14
      // Predicated region
      $region57: #{tpu_custom_call.1} parent=5 // pred_check
        %p1408 = pneg %p1407
      $region58: #{tpu_custom_call.1} parent=5 // pred_check_branch
        %1410 = sbr.rel (%p1408) target = $region60
      $region59: #{tpu_custom_call.1} parent=5 // pred_region
        %s1411 = ssub.s32 %s14, 2
      $region60: #{tpu_custom_call.1} parent=5 // pred_fallthru
        _
    $region6: #{tpu_custom_call.1} parent=1 // loop_footer
      %s18 = sadd.s32 1, %s14
    $region7: #{tpu_custom_call.1} parent=1 // loop_footer_branch
      %13 = sbr.rel target = $region3
    $region8: #{tpu_custom_call.1} parent=1 // loop_exit
      _
    %1412 = vsyncpa [#allocation4], 1
    %s1413 = scalar_lea.sflag [#allocation4], 1
    %1414 = vsyncpa %s1413, 1
    %1415 = vsyncpa [#allocation7], 1
    %1416 = vsyncpa [#allocation5], 1
    %s1417 = scalar_lea.sflag [#allocation5], 1
    %1418 = vsyncpa %s1417, 1

</llo_original>
